<compile_context>
chip_gen: v6e
topology: v6e:2x2x1
jax: 0.10.0
libtpu: 0.0.40
codegen_flags: <defaults>
</compile_context>

<pallas_src>
import functools

import numpy as np
import jax
import jax.numpy as jnp
from jax.experimental import pallas as pl
from jax.experimental.pallas import tpu as pltpu


def _round_up(x, m):
    return ((x + m - 1) // m) * m


def tokenizer_kernel(scal_ref, ids_ref, embp_ref, fused_ref, out_ref):
    """out = onehot(ids) @ emb_proj + x*fv + mask*fc + fused_bias."""
    tm = scal_ref.shape[0]
    num_nodes = embp_ref.shape[0]

    x = scal_ref[:, 0:1]          # (TM, 1)  value
    mask = scal_ref[:, 1:2]       # (TM, 1)  condition mask

    # NodeIDEmbed fused with its slice of the output projection:
    # gather expressed as a bf16 one-hot @ bf16 emb_proj matmul (f32 acc).
    iota = jax.lax.broadcasted_iota(jnp.int32, (tm, num_nodes), 1)
    onehot = (ids_ref[...] == iota).astype(embp_ref.dtype)
    gathered = jnp.dot(onehot, embp_ref[...], preferred_element_type=jnp.float32)

    fv = fused_ref[0:1, :]        # wv   @ W_out[0:dv]
    fc = fused_ref[1:2, :]        # cond @ W_out[dv+di:]
    fb = fused_ref[2:3, :]        # bv @ W_out[0:dv] + b_out

    out = gathered + x * fv + mask * fc + fb
    out_ref[...] = out.astype(out_ref.dtype)


def _fold_params(params, e_pad):
    """Fold value/condition/bias paths and the id-embed table into W_out."""
    dv = params["wv"].shape[1]
    di = params["emb"].shape[1]
    W = params["w_out"].astype(jnp.float32)             # (din, E)
    b = params["b_out"].astype(jnp.float32)             # (1, E)
    E = W.shape[1]
    Wv, Wi, Wc = W[:dv], W[dv:dv + di], W[dv + di:]

    fv = params["wv"].astype(jnp.float32) @ Wv           # (1, E)
    fc = params["cond"].astype(jnp.float32) @ Wc         # (1, E)
    fb = params["bv"].astype(jnp.float32) @ Wv + b       # (1, E)
    embp = params["emb"].astype(jnp.float32) @ Wi        # (num_nodes, E)

    if e_pad != E:
        pad = ((0, 0), (0, e_pad - E))
        fv = jnp.pad(fv, pad)
        fc = jnp.pad(fc, pad)
        fb = jnp.pad(fb, pad)
        embp = jnp.pad(embp, pad)

    fused = jnp.concatenate([fv, fc, fb], axis=0)        # (3, e_pad) f32
    return fused, embp.astype(jnp.bfloat16)              # (num_nodes, e_pad) bf16


def _run_pallas(scal, ids, embp, fused, *, tm, m_pad, e_pad, out_dtype,
                single_buffer_resident):
    num_nodes = embp.shape[0]
    resident_kw = (dict(pipeline_mode=pl.Buffered(1))
                   if single_buffer_resident else {})

    in_specs = [
        pl.BlockSpec((tm, 2), lambda i: (i, 0)),                         # x, mask
        pl.BlockSpec((tm, 1), lambda i: (i, 0)),                         # node ids
        pl.BlockSpec((num_nodes, e_pad), lambda i: (0, 0), **resident_kw),  # emb_proj
        pl.BlockSpec((3, e_pad), lambda i: (0, 0), **resident_kw),          # fv/fc/fb
    ]
    out_specs = pl.BlockSpec((tm, e_pad), lambda i: (i, 0))

    # Honest VMEM + cost accounting (post-padding sizes).
    out_itemsize = np.dtype(out_dtype).itemsize
    res_bufs = 1 if single_buffer_resident else 2
    tile_bytes = tm * 2 * 4 + tm * 1 * 4 + tm * e_pad * out_itemsize
    resident_bytes = (num_nodes * e_pad * 2) + (3 * e_pad * 4)
    work_bytes = tm * num_nodes * 2 + tm * e_pad * 4      # bf16 one-hot + f32 acc
    vmem_need = 2 * tile_bytes + res_bufs * resident_bytes + work_bytes
    try:
        vmem_cap = int(pltpu.get_tpu_info().vmem_capacity_bytes)
    except Exception:  # pragma: no cover - older API
        vmem_cap = 64 << 20
    vmem_limit = int(min(max(2 * vmem_need + (1 << 20), 16 << 20),
                         int(vmem_cap * 0.8)))

    flops = 2 * m_pad * num_nodes * e_pad + 6 * m_pad * e_pad
    bytes_accessed = (m_pad * 2 * 4 + m_pad * 1 * 4
                      + m_pad * e_pad * out_itemsize + resident_bytes)
    cost = pl.CostEstimate(flops=int(flops), transcendentals=0,
                           bytes_accessed=int(bytes_accessed))

    return pl.pallas_call(
        tokenizer_kernel,
        out_shape=jax.ShapeDtypeStruct((m_pad, e_pad), out_dtype),
        grid=(m_pad // tm,),
        in_specs=in_specs,
        out_specs=out_specs,
        compiler_params=pltpu.CompilerParams(
            dimension_semantics=("parallel",),
            vmem_limit_bytes=vmem_limit),
        cost_estimate=cost,
    )(scal, ids, embp, fused)


def tokenizer_forward(x, node_ids, condition_mask, params, *, tile_m=1024,
                      out_dtype=jnp.bfloat16):
    """x: (B,N,1) f32, node_ids: (B,N) int, condition_mask: (B,N,1) f32."""
    B, N, _ = x.shape
    M = B * N
    E = params["w_out"].shape[1]
    e_pad = _round_up(E, 128)     # lane-dense output (identity when E % 128 == 0)

    fused, embp = _fold_params(params, e_pad)

    x_flat = x.reshape(M, 1).astype(jnp.float32)
    mask_flat = condition_mask.reshape(M, 1).astype(jnp.float32)
    scal = jnp.concatenate([x_flat, mask_flat], axis=1)   # (M, 2) packed scalars
    ids = node_ids.reshape(M, 1).astype(jnp.int32)

    # Row tiling: tm is a multiple of the output sublane granularity, divides
    # the (rounded) token count exactly (no padded-output copy unless M itself
    # is misaligned), and leaves >=2 grid steps when M is big enough so a
    # parallel 1-D grid can use both v7x TensorCores.
    sub = 16 if np.dtype(out_dtype).itemsize == 2 else 8
    m_pad = _round_up(M, sub)
    cap = min(tile_m, m_pad)
    if m_pad >= 2 * sub:
        cap = min(cap, max(sub, (m_pad // 2) // sub * sub))
    cap = max(sub, (cap // sub) * sub)
    tm = sub
    for cand in range(cap, sub - 1, -sub):
        if m_pad % cand == 0:
            tm = cand
            break

    if m_pad != M:
        # Padded rows reuse node id 0 (in range); their outputs are sliced off.
        scal = jnp.pad(scal, ((0, m_pad - M), (0, 0)))
        ids = jnp.pad(ids, ((0, m_pad - M), (0, 0)))

    run = functools.partial(_run_pallas, scal, ids, embp, fused, tm=tm,
                            m_pad=m_pad, e_pad=e_pad, out_dtype=out_dtype)
    try:
        # Don't double-buffer the resident operands (saves VMEM, matters on v7x).
        out = run(single_buffer_resident=True)
    except Exception:
        # pipeline_mode / Buffered(1) unsupported in this JAX build -> default.
        out = run(single_buffer_resident=False)

    if m_pad != M or e_pad != E:
        out = out[:M, :E]
    return out.reshape(B, N, E)


def init_params(key, dim_value, dim_id, dim_condition, attn_embed_dim, num_nodes):
    ks = jax.random.split(key, 6)
    din = dim_value + dim_id + dim_condition
    # ValueEmbed.linear: weight (dv, 1), bias (dv,) -> stored as row vectors.
    wv = jax.random.normal(ks[0], (1, dim_value), jnp.float32) * 0.1
    bv = jax.random.normal(ks[1], (1, dim_value), jnp.float32) * 0.1
    # NodeIDEmbed.embedding: (num_nodes, dim_id)
    emb = jax.random.normal(ks[2], (num_nodes, dim_id), jnp.float32)
    # ConditionEmbed.condition_embedding: (1, 1, dc) * 0.5 -> stored (1, dc)
    cond = jax.random.normal(ks[3], (1, dim_condition), jnp.float32) * 0.5
    # output_proj: PyTorch weight (E, din); stored transposed (din, E).
    w_out = jax.random.normal(ks[4], (din, attn_embed_dim), jnp.float32) * 0.1
    b_out = jax.random.normal(ks[5], (1, attn_embed_dim), jnp.float32) * 0.1
    return {"wv": wv, "bv": bv, "emb": emb, "cond": cond,
            "w_out": w_out, "b_out": b_out}


def tokenizer_reference(x, node_ids, condition_mask, params):
    """Plain-JAX f32 reference mirroring the PyTorch forward."""
    val_emb = x * params["wv"][None] + params["bv"][None]              # (B,N,dv)
    id_emb = params["emb"][node_ids]                                   # (B,N,di)
    cond_emb = condition_mask * params["cond"][None]                   # (B,N,dc)
    token = jnp.concatenate([val_emb, id_emb, cond_emb], axis=-1)
    return token @ params["w_out"] + params["b_out"][None]


if __name__ == "__main__":
    # Small shapes consistent with the module's forward.
    B, N = 2, 8
    dim_value, dim_id, dim_condition = 8, 8, 8
    attn_embed_dim, num_nodes = 128, 16

    key = jax.random.PRNGKey(0)
    kx, kid, kmask, kparam = jax.random.split(key, 4)

    x = jax.random.normal(kx, (B, N, 1), jnp.float32)
    node_ids = jax.random.randint(kid, (B, N), 0, num_nodes, jnp.int32)
    condition_mask = jax.random.bernoulli(kmask, 0.5, (B, N, 1)).astype(jnp.float32)

    params = init_params(kparam, dim_value, dim_id, dim_condition,
                         attn_embed_dim, num_nodes)

    out = tokenizer_forward(x, node_ids, condition_mask, params)
    out = jax.block_until_ready(out)

    ref = tokenizer_reference(x, node_ids, condition_mask, params)
    assert out.shape == (B, N, attn_embed_dim)
    # bf16 gather / bf16 output path -> compare against the f32 reference at
    # bf16-level tolerance.
    assert jnp.allclose(out.astype(jnp.float32), ref, atol=5e-2, rtol=5e-2), \
        "mismatch vs reference"

    print("KERNEL_OK")
</pallas_src>

<mosaic_0001>
module attributes {stable_mosaic.version = 11 : i64} {
  func.func @tokenizer_kernel(%arg0: i32, %arg1: memref<16x2xf32, #tpu.memory_space<vmem>>, %arg2: memref<16x1xi32, #tpu.memory_space<vmem>>, %arg3: memref<16x128xbf16, #tpu.memory_space<vmem>>, %arg4: memref<3x128xf32, #tpu.memory_space<vmem>>, %arg5: memref<16x128xbf16, #tpu.memory_space<vmem>>) attributes {dimension_semantics = [#tpu.dimension_semantics<parallel>], iteration_bounds = array<i64: 1>, scalar_prefetch = 0 : i64, scratch_operands = 0 : i64, tpu.core_type = #tpu.core_type<tc>, window_params = [{transform_indices = @transform_0, window_bounds = array<i64: 16, 2>}, {transform_indices = @transform_1, window_bounds = array<i64: 16, 1>}, {pipeline_mode = #tpu.pipeline_mode<synchronous>, transform_indices = @transform_2, window_bounds = array<i64: 16, 128>}, {pipeline_mode = #tpu.pipeline_mode<synchronous>, transform_indices = @transform_3, window_bounds = array<i64: 3, 128>}, {transform_indices = @transform_4, window_bounds = array<i64: 16, 128>}]} {
    %c0 = arith.constant 0 : index
    %c0_0 = arith.constant 0 : index
    %0 = vector.load %arg1[%c0, %c0_0] : memref<16x2xf32, #tpu.memory_space<vmem>>, vector<16x1xf32>
    %c0_1 = arith.constant 0 : index
    %c1 = arith.constant 1 : index
    %1 = vector.load %arg1[%c0_1, %c1] : memref<16x2xf32, #tpu.memory_space<vmem>>, vector<16x1xf32>
    %2 = tpu.iota {dimensions = array<i32: 1>} : vector<16x16xi32>
    %c0_2 = arith.constant 0 : index
    %c0_3 = arith.constant 0 : index
    %3 = vector.load %arg2[%c0_2, %c0_3] : memref<16x1xi32, #tpu.memory_space<vmem>>, vector<16x1xi32>
    %4 = vector.broadcast %3 : vector<16x1xi32> to vector<16x16xi32>
    %5 = arith.cmpi eq, %4, %2 : vector<16x16xi32>
    %6 = arith.extui %5 : vector<16x16xi1> to vector<16x16xi32>
    %7 = arith.sitofp %6 : vector<16x16xi32> to vector<16x16xf32>
    %8 = arith.truncf %7 : vector<16x16xf32> to vector<16x16xbf16>
    %c0_4 = arith.constant 0 : index
    %c0_5 = arith.constant 0 : index
    %9 = vector.load %arg3[%c0_4, %c0_5] : memref<16x128xbf16, #tpu.memory_space<vmem>>, vector<16x128xbf16>
    %cst = arith.constant dense<0.000000e+00> : vector<16x128xf32>
    %10 = tpu.matmul %8, %9, %cst {dimension_numbers = #tpu.dot_dimension_numbers<[1], [0], [0], [1], [0, 0, 1, 1], [], []>} : vector<16x16xbf16>, vector<16x128xbf16>, vector<16x128xf32> -> vector<16x128xf32>
    %c0_6 = arith.constant 0 : index
    %c0_7 = arith.constant 0 : index
    %11 = vector.load %arg4[%c0_6, %c0_7] : memref<3x128xf32, #tpu.memory_space<vmem>>, vector<1x128xf32>
    %c1_8 = arith.constant 1 : index
    %c0_9 = arith.constant 0 : index
    %12 = vector.load %arg4[%c1_8, %c0_9] : memref<3x128xf32, #tpu.memory_space<vmem>>, vector<1x128xf32>
    %c2 = arith.constant 2 : index
    %c0_10 = arith.constant 0 : index
    %13 = vector.load %arg4[%c2, %c0_10] : memref<3x128xf32, #tpu.memory_space<vmem>>, vector<1x128xf32>
    %14 = vector.broadcast %0 : vector<16x1xf32> to vector<16x128xf32>
    %15 = vector.broadcast %11 : vector<1x128xf32> to vector<16x128xf32>
    %16 = arith.mulf %14, %15 : vector<16x128xf32>
    %17 = arith.addf %10, %16 : vector<16x128xf32>
    %18 = vector.broadcast %1 : vector<16x1xf32> to vector<16x128xf32>
    %19 = vector.broadcast %12 : vector<1x128xf32> to vector<16x128xf32>
    %20 = arith.mulf %18, %19 : vector<16x128xf32>
    %21 = arith.addf %17, %20 : vector<16x128xf32>
    %22 = vector.broadcast %13 : vector<1x128xf32> to vector<16x128xf32>
    %23 = arith.addf %21, %22 : vector<16x128xf32>
    %24 = arith.truncf %23 : vector<16x128xf32> to vector<16x128xbf16>
    %c0_11 = arith.constant 0 : index
    %c0_12 = arith.constant 0 : index
    %25 = vector.load %arg5[%c0_11, %c0_12] : memref<16x128xbf16, #tpu.memory_space<vmem>>, vector<16x128xbf16>
    tpu.vector_store %arg5[%c0_11, %c0_12], %24 {strides = array<i32>} : memref<16x128xbf16, #tpu.memory_space<vmem>>, vector<16x128xbf16>,
    return
  }
  func.func @transform_0(%arg0: i32) -> (i32, i32) {
    %c0_i32 = arith.constant 0 : i32
    %c0_i32_0 = arith.constant 0 : i32
    return %arg0, %c0_i32 : i32, i32
  }
  func.func @transform_1(%arg0: i32) -> (i32, i32) {
    %c0_i32 = arith.constant 0 : i32
    %c0_i32_0 = arith.constant 0 : i32
    return %arg0, %c0_i32 : i32, i32
  }
  func.func @transform_2(%arg0: i32) -> (i32, i32) {
    %c0_i32 = arith.constant 0 : i32
    %c0_i32_0 = arith.constant 0 : i32
    %c0_i32_1 = arith.constant 0 : i32
    return %c0_i32, %c0_i32_0 : i32, i32
  }
  func.func @transform_3(%arg0: i32) -> (i32, i32) {
    %c0_i32 = arith.constant 0 : i32
    %c0_i32_0 = arith.constant 0 : i32
    %c0_i32_1 = arith.constant 0 : i32
    return %c0_i32, %c0_i32_0 : i32, i32
  }
  func.func @transform_4(%arg0: i32) -> (i32, i32) {
    %c0_i32 = arith.constant 0 : i32
    %c0_i32_0 = arith.constant 0 : i32
    return %arg0, %c0_i32 : i32, i32
  }
}

module attributes {stable_mosaic.version = 11 : i64} {
  func.func @tokenizer_kernel(%arg0: i32, %arg1: memref<16x2xf32, #tpu.memory_space<vmem>>, %arg2: memref<16x1xi32, #tpu.memory_space<vmem>>, %arg3: memref<16x128xbf16, #tpu.memory_space<vmem>>, %arg4: memref<3x128xf32, #tpu.memory_space<vmem>>, %arg5: memref<16x128xbf16, #tpu.memory_space<vmem>>) attributes {dimension_semantics = [#tpu.dimension_semantics<parallel>], iteration_bounds = array<i64: 1>, scalar_prefetch = 0 : i64, scratch_operands = 0 : i64, tpu.core_type = #tpu.core_type<tc>, window_params = [{transform_indices = @transform_0, window_bounds = array<i64: 16, 2>}, {transform_indices = @transform_1, window_bounds = array<i64: 16, 1>}, {pipeline_mode = #tpu.pipeline_mode<synchronous>, transform_indices = @transform_2, window_bounds = array<i64: 16, 128>}, {pipeline_mode = #tpu.pipeline_mode<synchronous>, transform_indices = @transform_3, window_bounds = array<i64: 3, 128>}, {transform_indices = @transform_4, window_bounds = array<i64: 16, 128>}]} {
    %c0 = arith.constant 0 : index
    %c0_0 = arith.constant 0 : index
    %0 = vector.load %arg1[%c0, %c0_0] : memref<16x2xf32, #tpu.memory_space<vmem>>, vector<16x1xf32>
    %c0_1 = arith.constant 0 : index
    %c1 = arith.constant 1 : index
    %1 = vector.load %arg1[%c0_1, %c1] : memref<16x2xf32, #tpu.memory_space<vmem>>, vector<16x1xf32>
    %2 = tpu.iota {dimensions = array<i32: 1>} : vector<16x16xi32>
    %c0_2 = arith.constant 0 : index
    %c0_3 = arith.constant 0 : index
    %3 = vector.load %arg2[%c0_2, %c0_3] : memref<16x1xi32, #tpu.memory_space<vmem>>, vector<16x1xi32>
    %4 = vector.broadcast %3 : vector<16x1xi32> to vector<16x16xi32>
    %5 = arith.cmpi eq, %4, %2 : vector<16x16xi32>
    %6 = arith.extui %5 : vector<16x16xi1> to vector<16x16xi32>
    %7 = arith.sitofp %6 : vector<16x16xi32> to vector<16x16xf32>
    %8 = arith.truncf %7 : vector<16x16xf32> to vector<16x16xbf16>
    %c0_4 = arith.constant 0 : index
    %c0_5 = arith.constant 0 : index
    %9 = vector.load %arg3[%c0_4, %c0_5] : memref<16x128xbf16, #tpu.memory_space<vmem>>, vector<16x128xbf16>
    %cst = arith.constant dense<0.000000e+00> : vector<16x128xf32>
    %10 = tpu.matmul %8, %9, %cst {dimension_numbers = #tpu.dot_dimension_numbers<[1], [0], [0], [1], [0, 0, 1, 1], [], []>} : vector<16x16xbf16>, vector<16x128xbf16>, vector<16x128xf32> -> vector<16x128xf32>
    %c0_6 = arith.constant 0 : index
    %c0_7 = arith.constant 0 : index
    %11 = vector.load %arg4[%c0_6, %c0_7] : memref<3x128xf32, #tpu.memory_space<vmem>>, vector<1x128xf32>
    %c1_8 = arith.constant 1 : index
    %c0_9 = arith.constant 0 : index
    %12 = vector.load %arg4[%c1_8, %c0_9] : memref<3x128xf32, #tpu.memory_space<vmem>>, vector<1x128xf32>
    %c2 = arith.constant 2 : index
    %c0_10 = arith.constant 0 : index
    %13 = vector.load %arg4[%c2, %c0_10] : memref<3x128xf32, #tpu.memory_space<vmem>>, vector<1x128xf32>
    %14 = vector.broadcast %0 : vector<16x1xf32> to vector<16x128xf32>
    %15 = vector.broadcast %11 : vector<1x128xf32> to vector<16x128xf32>
    %16 = arith.mulf %14, %15 : vector<16x128xf32>
    %17 = arith.addf %10, %16 : vector<16x128xf32>
    %18 = vector.broadcast %1 : vector<16x1xf32> to vector<16x128xf32>
    %19 = vector.broadcast %12 : vector<1x128xf32> to vector<16x128xf32>
    %20 = arith.mulf %18, %19 : vector<16x128xf32>
    %21 = arith.addf %17, %20 : vector<16x128xf32>
    %22 = vector.broadcast %13 : vector<1x128xf32> to vector<16x128xf32>
    %23 = arith.addf %21, %22 : vector<16x128xf32>
    %24 = arith.truncf %23 : vector<16x128xf32> to vector<16x128xbf16>
    %c0_11 = arith.constant 0 : index
    %c0_12 = arith.constant 0 : index
    %25 = vector.load %arg5[%c0_11, %c0_12] : memref<16x128xbf16, #tpu.memory_space<vmem>>, vector<16x128xbf16>
    tpu.vector_store %arg5[%c0_11, %c0_12], %24 {strides = array<i32>} : memref<16x128xbf16, #tpu.memory_space<vmem>>, vector<16x128xbf16>,
    return
  }
  func.func @transform_0(%arg0: i32) -> (i32, i32) {
    %c0_i32 = arith.constant 0 : i32
    %c0_i32_0 = arith.constant 0 : i32
    return %arg0, %c0_i32 : i32, i32
  }
  func.func @transform_1(%arg0: i32) -> (i32, i32) {
    %c0_i32 = arith.constant 0 : i32
    %c0_i32_0 = arith.constant 0 : i32
    return %arg0, %c0_i32 : i32, i32
  }
  func.func @transform_2(%arg0: i32) -> (i32, i32) {
    %c0_i32 = arith.constant 0 : i32
    %c0_i32_0 = arith.constant 0 : i32
    %c0_i32_1 = arith.constant 0 : i32
    return %c0_i32, %c0_i32_0 : i32, i32
  }
  func.func @transform_3(%arg0: i32) -> (i32, i32) {
    %c0_i32 = arith.constant 0 : i32
    %c0_i32_0 = arith.constant 0 : i32
    %c0_i32_1 = arith.constant 0 : i32
    return %c0_i32, %c0_i32_0 : i32, i32
  }
  func.func @transform_4(%arg0: i32) -> (i32, i32) {
    %c0_i32 = arith.constant 0 : i32
    %c0_i32_0 = arith.constant 0 : i32
    return %arg0, %c0_i32 : i32, i32
  }
}

</mosaic_0001>

<llo_original>
// kernel: tpu_custom_call.1
$region0: #{tpu_custom_call.1}
  #allocation0 [shape = 'u32[]', space=smem, size = 0x4, offset = 0x4, fixed_abs, tag = 'smem constant byte address 0x4 - core index']
  #allocation1 [shape = 'u32[144,128]{1,0:T(1,128)}', space=vmem, size = 0x12000, scoped, tag = 'internal scratch']
  %s0 = inlined_call_operand.vmem [shape: f32[16,2], index: 0, kind: input, shape index: {}]
  %s1 = inlined_call_operand.vmem [shape: s32[16,1], index: 1, kind: input, shape index: {}]
  %s2 = inlined_call_operand.vmem [shape: bf16[16,128], index: 2, kind: input, shape index: {}]
  %s3 = inlined_call_operand.vmem [shape: f32[3,128], index: 3, kind: input, shape index: {}]
  %s4 = inlined_call_operand.hbm [shape: bf16[16,128], index: 4, kind: output, shape index: {}]
  %s5 = sld [smem:[#allocation0]]
  $region26: #{tpu_custom_call.1} parent=0
    _
  %s7 = ssub.s32 1, %s5
  %s8 = scalar_select 0, %s7, %s5
  $region1: #{tpu_custom_call.1} parent=0
    #allocation2 [shape = 'u8[4096]{0}', space=vmem, size = 0x1000, scoped, tag = 'output window, operand 0, single buffered']
    #allocation3 [shape = 's32[1]{0}', space=sflag, size = 0x4, scoped, tag = 'scoped memory for tpu_custom_call.1']
    %9 = vsyncpa [#allocation3], 0
    // Predicated region
    $region2: #{tpu_custom_call.1} parent=1 // pred_check
      _
    $region3: #{tpu_custom_call.1} parent=1 // pred_check_branch
      %11 = sbr.rel (0) target = $region5
    $region4: #{tpu_custom_call.1} parent=1 // pred_region
      _
    $region5: #{tpu_custom_call.1} parent=1 // pred_fallthru
      _
    // Predicated region
    $region6: #{tpu_custom_call.1} parent=1 // pred_check
      _
    $region7: #{tpu_custom_call.1} parent=1 // pred_check_branch
      %13 = sbr.rel (0) target = $region9
    $region8: #{tpu_custom_call.1} parent=1 // pred_region
      _
    $region9: #{tpu_custom_call.1} parent=1 // pred_fallthru
      _
    // Predicated region
    $region10: #{tpu_custom_call.1} parent=1 // pred_check
      _
    $region11: #{tpu_custom_call.1} parent=1 // pred_check_branch
      %15 = sbr.rel (0) target = $region13
    $region12: #{tpu_custom_call.1} parent=1 // pred_region
      _
    $region13: #{tpu_custom_call.1} parent=1 // pred_fallthru
      _
    // Predicated region
    $region14: #{tpu_custom_call.1} parent=1 // pred_check
      _
    $region15: #{tpu_custom_call.1} parent=1 // pred_check_branch
      %17 = sbr.rel (0) target = $region17
    $region16: #{tpu_custom_call.1} parent=1 // pred_region
      _
    $region17: #{tpu_custom_call.1} parent=1 // pred_fallthru
      _
    %v19 = vld [vmem:[%s0] sm:$0xff]
    %v20 = vld [vmem:[%s0 + $0x8] sm:$0xff]
    %v21 = vlaneseq
    %v22 = vand.u32 %v21, 127
    %v23 = vld [vmem:[%s1] sm:$0xff]
    %v24 = vld [vmem:[%s1 + $0x8] sm:$0xff]
    %25 = vset.pattern.permute.xlu0 0
    %26 = vperm.xlu0 %25, %v23
    %v27 = vpop.permute.xlu0 %26
    %28 = vset.pattern.permute.xlu0 0
    %29 = vperm.xlu0 %28, %v24
    %v30 = vpop.permute.xlu0 %29
    %vm31 = vcmp.eq.s32.totalorder %v27, %v22
    %vm32 = vcmp.eq.s32.totalorder %v30, %v22
    %v33 = vsel %vm31, 1, 0
    %v34 = vsel %vm32, 1, 0
    %v35 = vcvt.s32.f32 %v33
    %v36 = vcvt.s32.f32 %v34
    %v37 = vpack.c.bf16 %v36, %v35
    %v38 = vld [vmem:[%s2] sm:$0xf]
    %v39 = vld [vmem:[%s2 + $0x4] sm:$0xf]
    %v40 = vld [vmem:[%s3] sm:$0x1]
    %v41 = vld [vmem:[%s3 + $0x1] sm:$0x1]
    %v42 = vld [vmem:[%s3 + $0x2] sm:$0x1]
    %44 = vset.pattern.permute.xlu0 0
    %45 = vperm.xlu0 %44, %v19
    %v46 = vpop.permute.xlu0 %45
    %49 = vset.pattern.permute.xlu0 0
    %50 = vperm.xlu0 %49, %v20
    %v51 = vpop.permute.xlu0 %50
    %v53 = vlaneseq
    %v54 = vshrl.u32 %v53, 7
    %v55 = vsub.s32 0, %v54
    %v56 = vrot.slane %v40, %v55
    %v57 = vmul.f32 %v46, %v56
    %v58 = vmul.f32 %v51, %v56
    %v61 = vunpack.c.l.b16 %v38
    %v62 = vunpack.c.l.b16 %v39
    %v63 = vpack.c.b16 %v62, %v61
    %vm65 = vcmask 130048
    %v67 = vsel %vm65, %v37, 0
    %69 = vmatprep.subr.bf16.mxu0 0
    %70 = vmatpush1.bf16.msra.mxu0 0
    %71 = vmatprep.subr.bf16.mxu0 0
    %72 = vmatpush1.bf16.msra.mxu0 0
    %73 = vmatprep.subr.bf16.mxu0 0
    %74 = vmatpush1.bf16.msra.mxu0 0
    %75 = vmatprep.subr.bf16.mxu0 0
    %76 = vmatpush1.bf16.msra.mxu0 0
    %77 = vmatprep.subr.bf16.mxu0 0
    %78 = vmatpush1.bf16.msra.mxu0 0
    %79 = vmatprep.subr.bf16.mxu0 0
    %80 = vmatpush1.bf16.msra.mxu0 0
    %81 = vmatprep.subr.bf16.mxu0 0
    %82 = vmatpush1.bf16.msra.mxu0 0
    %83 = vmatprep.subr.bf16.mxu0 0
    %84 = vmatpush1.bf16.msra.mxu0 %v63
    %85 = vmatprep.subr.bf16.mxu0 0
    %86 = vmatpush2.bf16.msra.mxu0 0
    %87 = vmatprep.subr.bf16.mxu0 0
    %88 = vmatpush2.bf16.msra.mxu0 0
    %89 = vmatprep.subr.bf16.mxu0 0
    %90 = vmatpush2.bf16.msra.mxu0 0
    %91 = vmatprep.subr.bf16.mxu0 0
    %92 = vmatpush2.bf16.msra.mxu0 0
    %93 = vmatprep.subr.bf16.mxu0 0
    %94 = vmatpush2.bf16.msra.mxu0 0
    %95 = vmatprep.subr.bf16.mxu0 0
    %96 = vmatpush2.bf16.msra.mxu0 0
    %97 = vmatprep.subr.bf16.mxu0 0
    %98 = vmatpush2.bf16.msra.mxu0 0
    %99 = vmatprep.subr.bf16.mxu0 0
    %100 = vmatpush2.bf16.msra.mxu0 0
    %101 = vmatprep.mubr.bf16.mxu0 0
    %102 = vmatmul.mubr.bf16.gmra.mxu0 %v67
    %v103 = vpop.f32.mrf.mxu0
    %v104 = vadd.f32 %v57, %v103
    %v105 = vpop.f32.mrf.mxu0
    %v106 = vpop.f32.mrf.mxu0
    %v107 = vadd.f32 %v58, %v106
    %v108 = vpop.f32.mrf.mxu0
    %109 = vdwg.mxu0
    %110 = vset.pattern.permute.xlu0 1
    %111 = vperm.xlu0 %110, %v19
    %v112 = vpop.permute.xlu0 %111
    %114 = vset.pattern.permute.xlu0 1
    %115 = vperm.xlu0 %114, %v20
    %v116 = vpop.permute.xlu0 %115
    %v118 = vlaneseq
    %v119 = vshrl.u32 %v118, 7
    %v120 = vsub.s32 0, %v119
    %v121 = vrot.slane %v41, %v120
    %v122 = vmul.f32 %v112, %v121
    %v123 = vmul.f32 %v116, %v121
    %v124 = vadd.f32 %v104, %v122
    %v125 = vadd.f32 %v107, %v123
    %v126 = vlaneseq
    %v127 = vshrl.u32 %v126, 7
    %v128 = vsub.s32 0, %v127
    %v129 = vrot.slane %v42, %v128
    %v130 = vadd.f32 %v124, %v129
    %v131 = vadd.f32 %v125, %v129
    %v132 = vpack.c.bf16 %v131, %v130
    %v134 = vunpack.c.l.b16 %v132
    %v135 = vunpack.c.h.b16 %v132
    %v136 = vpack.c.b16 %v134, %v134
    %v137 = vpack.c.b16 %v135, %v135
    %140 = vst [vmem:[#allocation2] sm:$0xf] %v136
    %141 = vst [vmem:[#allocation2 + $0x4] sm:$0xf] %v137
    // Predicated region
    $region18: #{tpu_custom_call.1} parent=1 // pred_check
      _
    $region19: #{tpu_custom_call.1} parent=1 // pred_check_branch
      %143 = sbr.rel (0) target = $region21
    $region20: #{tpu_custom_call.1} parent=1 // pred_region
      %s145 = ssub.s32 128, 128
      %146 = vsyncadd [#allocation3], %s145
      %s147 = sshll.u32 [#allocation2], 4
      %s148 = int_to_ptr.vmem [resolvable:$true] %s147
      %153 = dma.vmem_to_hbm [thread:$0]  %s148, 128, %s4, [#allocation3], 64, 64, 4
    $region21: #{tpu_custom_call.1} parent=1 // pred_fallthru
      _
    // Predicated region
    $region22: #{tpu_custom_call.1} parent=1 // pred_check
      _
    $region23: #{tpu_custom_call.1} parent=1 // pred_check_branch
      %155 = sbr.rel (0) target = $region25
    $region24: #{tpu_custom_call.1} parent=1 // pred_region
      %156 = dma.done [#allocation3], 128
    $region25: #{tpu_custom_call.1} parent=1 // pred_fallthru
      _
    %157 = vsyncpa [#allocation3], 1

// kernel: tpu_custom_call.1
$region0: #{tpu_custom_call.1}
  #allocation0 [shape = 'u32[]', space=smem, size = 0x4, offset = 0x4, fixed_abs, tag = 'smem constant byte address 0x4 - core index']
  #allocation1 [shape = 'u32[144,128]{1,0:T(1,128)}', space=vmem, size = 0x12000, scoped, tag = 'internal scratch']
  %s0 = inlined_call_operand.vmem [shape: f32[16,2], index: 0, kind: input, shape index: {}]
  %s1 = inlined_call_operand.vmem [shape: s32[16,1], index: 1, kind: input, shape index: {}]
  %s2 = inlined_call_operand.vmem [shape: bf16[16,128], index: 2, kind: input, shape index: {}]
  %s3 = inlined_call_operand.vmem [shape: f32[3,128], index: 3, kind: input, shape index: {}]
  %s4 = inlined_call_operand.hbm [shape: bf16[16,128], index: 4, kind: output, shape index: {}]
  %s5 = sld [smem:[#allocation0]]
  $region26: #{tpu_custom_call.1} parent=0
    _
  %s7 = ssub.s32 1, %s5
  %s8 = scalar_select 0, %s7, %s5
  $region1: #{tpu_custom_call.1} parent=0
    #allocation2 [shape = 'u8[4096]{0}', space=vmem, size = 0x1000, scoped, tag = 'output window, operand 0, single buffered']
    #allocation3 [shape = 's32[1]{0}', space=sflag, size = 0x4, scoped, tag = 'scoped memory for tpu_custom_call.1']
    %9 = vsyncpa [#allocation3], 0
    // Predicated region
    $region2: #{tpu_custom_call.1} parent=1 // pred_check
      _
    $region3: #{tpu_custom_call.1} parent=1 // pred_check_branch
      %11 = sbr.rel (0) target = $region5
    $region4: #{tpu_custom_call.1} parent=1 // pred_region
      _
    $region5: #{tpu_custom_call.1} parent=1 // pred_fallthru
      _
    // Predicated region
    $region6: #{tpu_custom_call.1} parent=1 // pred_check
      _
    $region7: #{tpu_custom_call.1} parent=1 // pred_check_branch
      %13 = sbr.rel (0) target = $region9
    $region8: #{tpu_custom_call.1} parent=1 // pred_region
      _
    $region9: #{tpu_custom_call.1} parent=1 // pred_fallthru
      _
    // Predicated region
    $region10: #{tpu_custom_call.1} parent=1 // pred_check
      _
    $region11: #{tpu_custom_call.1} parent=1 // pred_check_branch
      %15 = sbr.rel (0) target = $region13
    $region12: #{tpu_custom_call.1} parent=1 // pred_region
      _
    $region13: #{tpu_custom_call.1} parent=1 // pred_fallthru
      _
    // Predicated region
    $region14: #{tpu_custom_call.1} parent=1 // pred_check
      _
    $region15: #{tpu_custom_call.1} parent=1 // pred_check_branch
      %17 = sbr.rel (0) target = $region17
    $region16: #{tpu_custom_call.1} parent=1 // pred_region
      _
    $region17: #{tpu_custom_call.1} parent=1 // pred_fallthru
      _
    %v19 = vld [vmem:[%s0] sm:$0xff]
    %v20 = vld [vmem:[%s0 + $0x8] sm:$0xff]
    %v21 = vlaneseq
    %v22 = vand.u32 %v21, 127
    %v23 = vld [vmem:[%s1] sm:$0xff]
    %v24 = vld [vmem:[%s1 + $0x8] sm:$0xff]
    %25 = vset.pattern.permute.xlu0 0
    %26 = vperm.xlu0 %25, %v23
    %v27 = vpop.permute.xlu0 %26
    %28 = vset.pattern.permute.xlu0 0
    %29 = vperm.xlu0 %28, %v24
    %v30 = vpop.permute.xlu0 %29
    %vm31 = vcmp.eq.s32.totalorder %v27, %v22
    %vm32 = vcmp.eq.s32.totalorder %v30, %v22
    %v33 = vsel %vm31, 1, 0
    %v34 = vsel %vm32, 1, 0
    %v35 = vcvt.s32.f32 %v33
    %v36 = vcvt.s32.f32 %v34
    %v37 = vpack.c.bf16 %v36, %v35
    %v38 = vld [vmem:[%s2] sm:$0xf]
    %v39 = vld [vmem:[%s2 + $0x4] sm:$0xf]
    %v40 = vld [vmem:[%s3] sm:$0x1]
    %v41 = vld [vmem:[%s3 + $0x1] sm:$0x1]
    %v42 = vld [vmem:[%s3 + $0x2] sm:$0x1]
    %44 = vset.pattern.permute.xlu0 0
    %45 = vperm.xlu0 %44, %v19
    %v46 = vpop.permute.xlu0 %45
    %49 = vset.pattern.permute.xlu0 0
    %50 = vperm.xlu0 %49, %v20
    %v51 = vpop.permute.xlu0 %50
    %v53 = vlaneseq
    %v54 = vshrl.u32 %v53, 7
    %v55 = vsub.s32 0, %v54
    %v56 = vrot.slane %v40, %v55
    %v57 = vmul.f32 %v46, %v56
    %v58 = vmul.f32 %v51, %v56
    %v61 = vunpack.c.l.b16 %v38
    %v62 = vunpack.c.l.b16 %v39
    %v63 = vpack.c.b16 %v62, %v61
    %vm65 = vcmask 130048
    %v67 = vsel %vm65, %v37, 0
    %69 = vmatprep.subr.bf16.mxu0 0
    %70 = vmatpush1.bf16.msra.mxu0 0
    %71 = vmatprep.subr.bf16.mxu0 0
    %72 = vmatpush1.bf16.msra.mxu0 0
    %73 = vmatprep.subr.bf16.mxu0 0
    %74 = vmatpush1.bf16.msra.mxu0 0
    %75 = vmatprep.subr.bf16.mxu0 0
    %76 = vmatpush1.bf16.msra.mxu0 0
    %77 = vmatprep.subr.bf16.mxu0 0
    %78 = vmatpush1.bf16.msra.mxu0 0
    %79 = vmatprep.subr.bf16.mxu0 0
    %80 = vmatpush1.bf16.msra.mxu0 0
    %81 = vmatprep.subr.bf16.mxu0 0
    %82 = vmatpush1.bf16.msra.mxu0 0
    %83 = vmatprep.subr.bf16.mxu0 0
    %84 = vmatpush1.bf16.msra.mxu0 %v63
    %85 = vmatprep.subr.bf16.mxu0 0
    %86 = vmatpush2.bf16.msra.mxu0 0
    %87 = vmatprep.subr.bf16.mxu0 0
    %88 = vmatpush2.bf16.msra.mxu0 0
    %89 = vmatprep.subr.bf16.mxu0 0
    %90 = vmatpush2.bf16.msra.mxu0 0
    %91 = vmatprep.subr.bf16.mxu0 0
    %92 = vmatpush2.bf16.msra.mxu0 0
    %93 = vmatprep.subr.bf16.mxu0 0
    %94 = vmatpush2.bf16.msra.mxu0 0
    %95 = vmatprep.subr.bf16.mxu0 0
    %96 = vmatpush2.bf16.msra.mxu0 0
    %97 = vmatprep.subr.bf16.mxu0 0
    %98 = vmatpush2.bf16.msra.mxu0 0
    %99 = vmatprep.subr.bf16.mxu0 0
    %100 = vmatpush2.bf16.msra.mxu0 0
    %101 = vmatprep.mubr.bf16.mxu0 0
    %102 = vmatmul.mubr.bf16.gmra.mxu0 %v67
    %v103 = vpop.f32.mrf.mxu0
    %v104 = vadd.f32 %v57, %v103
    %v105 = vpop.f32.mrf.mxu0
    %v106 = vpop.f32.mrf.mxu0
    %v107 = vadd.f32 %v58, %v106
    %v108 = vpop.f32.mrf.mxu0
    %109 = vdwg.mxu0
    %110 = vset.pattern.permute.xlu0 1
    %111 = vperm.xlu0 %110, %v19
    %v112 = vpop.permute.xlu0 %111
    %114 = vset.pattern.permute.xlu0 1
    %115 = vperm.xlu0 %114, %v20
    %v116 = vpop.permute.xlu0 %115
    %v118 = vlaneseq
    %v119 = vshrl.u32 %v118, 7
    %v120 = vsub.s32 0, %v119
    %v121 = vrot.slane %v41, %v120
    %v122 = vmul.f32 %v112, %v121
    %v123 = vmul.f32 %v116, %v121
    %v124 = vadd.f32 %v104, %v122
    %v125 = vadd.f32 %v107, %v123
    %v126 = vlaneseq
    %v127 = vshrl.u32 %v126, 7
    %v128 = vsub.s32 0, %v127
    %v129 = vrot.slane %v42, %v128
    %v130 = vadd.f32 %v124, %v129
    %v131 = vadd.f32 %v125, %v129
    %v132 = vpack.c.bf16 %v131, %v130
    %v134 = vunpack.c.l.b16 %v132
    %v135 = vunpack.c.h.b16 %v132
    %v136 = vpack.c.b16 %v134, %v134
    %v137 = vpack.c.b16 %v135, %v135
    %140 = vst [vmem:[#allocation2] sm:$0xf] %v136
    %141 = vst [vmem:[#allocation2 + $0x4] sm:$0xf] %v137
    // Predicated region
    $region18: #{tpu_custom_call.1} parent=1 // pred_check
      _
    $region19: #{tpu_custom_call.1} parent=1 // pred_check_branch
      %143 = sbr.rel (0) target = $region21
    $region20: #{tpu_custom_call.1} parent=1 // pred_region
      %s145 = ssub.s32 128, 128
      %146 = vsyncadd [#allocation3], %s145
      %s147 = sshll.u32 [#allocation2], 4
      %s148 = int_to_ptr.vmem [resolvable:$true] %s147
      %153 = dma.vmem_to_hbm [thread:$0]  %s148, 128, %s4, [#allocation3], 64, 64, 4
    $region21: #{tpu_custom_call.1} parent=1 // pred_fallthru
      _
    // Predicated region
    $region22: #{tpu_custom_call.1} parent=1 // pred_check
      _
    $region23: #{tpu_custom_call.1} parent=1 // pred_check_branch
      %155 = sbr.rel (0) target = $region25
    $region24: #{tpu_custom_call.1} parent=1 // pred_region
      %156 = dma.done [#allocation3], 128
    $region25: #{tpu_custom_call.1} parent=1 // pred_fallthru
      _
    %157 = vsyncpa [#allocation3], 1

</llo_original>
